<compile_context>
chip_gen: v6e
topology: v6e:2x2x1
jax: 0.10.0
libtpu: 0.0.40
codegen_flags: <defaults>
</compile_context>

<pallas_src>
import functools

import jax
import jax.numpy as jnp
from jax.experimental import pallas as pl
from jax.experimental.pallas import tpu as pltpu

_LANE = 128
_MXU = 256


def _round_up(x: int, m: int) -> int:
    return ((x + m - 1) // m) * m


def _linear_head_kernel(x_ref, w1_ref, b1_ref, w2_ref, b2_ref, o_ref, acc_ref):
    """One (batch-tile, K-tile) step of: tanh(x @ W1 + b1) @ W2 + b2."""
    k = pl.program_id(1)

    @pl.when(k == 0)
    def _init():
        acc_ref[...] = jnp.zeros_like(acc_ref)

    # Partial first matmul over this K tile, accumulated in f32 on the MXU.
    acc_ref[...] += jnp.dot(
        x_ref[...], w1_ref[...], preferred_element_type=jnp.float32
    )

    @pl.when(k == pl.num_programs(1) - 1)
    def _finalize():
        # Bias + tanh in f32 (tanh goes to the EUP slot -> essentially free).
        h = jnp.tanh(acc_ref[...] + b1_ref[...].astype(jnp.float32))
        # Second matmul in the weight dtype (bf16 weights -> bf16 MXU
        # operands), f32 accumulation, bias, single lane-dense store.
        out = jnp.dot(
            h.astype(w2_ref.dtype), w2_ref[...],
            preferred_element_type=jnp.float32,
        )
        out = out + b2_ref[...].astype(jnp.float32)
        o_ref[...] = out.astype(o_ref.dtype)


def _const_spec(shape):
    """Block-index-constant operand: a second pipeline buffer is pure waste."""
    try:
        return pl.BlockSpec(shape, lambda i, k: (0, 0),
                            pipeline_mode=pl.Buffered(1))
    except Exception:  # older jax without pipeline_mode kwarg
        return pl.BlockSpec(shape, lambda i, k: (0, 0))


@functools.partial(jax.jit, static_argnames=("tm", "tk", "use_bf16", "w1_buffers"))
def linear_head(x, w1, b1, w2, b2, *, tm=None, tk=None, use_bf16=True,
                w1_buffers=None):
    """x: (B, input_dim); w1: (input_dim, inner_dim); b1: (1, inner_dim);
    w2: (inner_dim, num_classes); b2: (1, num_classes).  -> (B, num_classes)."""
    B, K = x.shape
    K_w, H = w1.shape
    assert K_w == K and b1.shape == (1, H)
    H_w, C = w2.shape
    assert H_w == H and b2.shape == (1, C)

    out_dtype = x.dtype
    # bf16 streamed operands, f32 accumulation (largest single lever).
    cdtype = jnp.bfloat16 if (use_bf16 and x.dtype == jnp.float32) else x.dtype
    x = x.astype(cdtype)
    w1 = w1.astype(cdtype)
    w2 = w2.astype(cdtype)

    ic = jnp.dtype(cdtype).itemsize          # streamed / compute itemsize
    oc = jnp.dtype(out_dtype).itemsize
    b1_is = jnp.dtype(b1.dtype).itemsize
    b2_is = jnp.dtype(b2.dtype).itemsize

    # ---- generation-aware VMEM budget -------------------------------------
    try:
        vmem_cap = int(pltpu.get_tpu_info().vmem_capacity_bytes)
    except Exception:
        vmem_cap = 64 * 1024 * 1024          # conservative (v7x-sized) fallback
    vmem_budget = max(vmem_cap - 12 * 1024 * 1024, 16 * 1024 * 1024)

    # dtype-aware sublane multiple: 8 (f32) / 16 (bf16) / 32 (int8/fp8).
    sub = {4: 8, 2: 16, 1: 32}.get(ic, 8)

    # Lane-dense padded output width (unmasked vst stores).
    C_pad = _round_up(max(C, _LANE), _LANE)

    # ---- K tile: stream w1; keep its in-flight buffers within budget ------
    if tk is not None:
        TK = _round_up(tk, _LANE)
    else:
        TK = min(512, _round_up(K, _LANE))
        while TK > _LANE and 2 * TK * H * ic > 0.35 * vmem_budget:
            TK //= 2
        TK = max(_LANE, _round_up(TK, _LANE))
    w1_bufs = 2 if w1_buffers is None else int(w1_buffers)

    # ---- batch tile: as large as VMEM allows (amortize w1 streaming) ------
    B_sub = _round_up(B, sub)
    per_row = 2 * TK * ic + 2 * C_pad * oc + H * 4        # x tile + out tile + acc
    fixed = (w1_bufs * TK * H * ic + H * b1_is + H * C_pad * ic + C_pad * b2_is)
    if tm is not None:
        TM = _round_up(tm, sub)
    else:
        avail = int(0.9 * vmem_budget) - fixed
        TM_cap = max(sub, (max(avail, 0) // per_row) // sub * sub)
        TM = min(B_sub, TM_cap)
        if TM < B_sub and TM >= _MXU:
            TM = (TM // _MXU) * _MXU          # full-width MXU passes when tiling B
        # v7x megacore: keep >= 2 batch tiles when compute-bound (each half
        # still has >= ~1024 flop/byte on the w1 stream).
        if TM >= B_sub and B_sub >= 2048:
            TM = _round_up(B_sub // 2, _MXU)

    B_pad = _round_up(B, TM)
    K_pad = _round_up(K, TK)

    # ---- zero-pad operands (padding contributes nothing to the matmuls) ---
    x_p = jnp.pad(x, ((0, B_pad - B), (0, K_pad - K))) if (B_pad != B or K_pad != K) else x
    w1_p = jnp.pad(w1, ((0, K_pad - K), (0, 0))) if K_pad != K else w1
    w2_p = jnp.pad(w2, ((0, 0), (0, C_pad - C))) if C_pad != C else w2
    b2_p = jnp.pad(b2, ((0, 0), (0, C_pad - C))) if C_pad != C else b2

    grid = (B_pad // TM, K_pad // TK)

    # ---- VMEM limit sized to the actual buffers, clamped to the chip ------
    needed = (2 * TM * TK * ic                 # x tile (double-buffered)
              + w1_bufs * TK * H * ic          # w1 stream
              + H * b1_is                      # b1 (single-buffered)
              + H * C_pad * ic                 # w2 (single-buffered, resident)
              + C_pad * b2_is                  # b2
              + 2 * TM * C_pad * oc            # out tile
              + TM * H * 4)                    # f32 accumulator scratch
    vmem_limit = min(max(int(needed * 1.2), 16 * 1024 * 1024), vmem_budget)

    n_btiles = grid[0]
    cost = pl.CostEstimate(
        flops=2 * B_pad * K_pad * H + 2 * B_pad * H * C_pad,
        transcendentals=B_pad * H,
        bytes_accessed=(
            B_pad * K_pad * ic
            + n_btiles * K_pad * H * ic         # w1 re-streamed per batch tile
            + n_btiles * (H * b1_is + H * C_pad * ic + C_pad * b2_is)
            + B_pad * C_pad * oc),
    )

    w1_spec_kwargs = {}
    if w1_bufs != 2:
        w1_spec_kwargs["pipeline_mode"] = pl.Buffered(w1_bufs)
    w1_spec = pl.BlockSpec((TK, H), lambda i, k: (k, 0), **w1_spec_kwargs)

    out_padded = pl.pallas_call(
        _linear_head_kernel,
        out_shape=jax.ShapeDtypeStruct((B_pad, C_pad), out_dtype),
        grid_spec=pltpu.PrefetchScalarGridSpec(
            num_scalar_prefetch=0,
            grid=grid,
            in_specs=[
                pl.BlockSpec((TM, TK), lambda i, k: (i, k)),   # x   (pipelined)
                w1_spec,                                        # w1  (streamed over K)
                _const_spec((1, H)),                            # b1  (resident)
                _const_spec((H, C_pad)),                        # w2  (resident)
                _const_spec((1, C_pad)),                        # b2  (resident)
            ],
            out_specs=pl.BlockSpec((TM, C_pad), lambda i, k: (i, 0)),
            scratch_shapes=[pltpu.VMEM((TM, H), jnp.float32)],
        ),
        compiler_params=pltpu.CompilerParams(
            dimension_semantics=("parallel", "arbitrary"),
            vmem_limit_bytes=vmem_limit,
        ),
        cost_estimate=cost,
    )(x_p, w1_p, b1, w2_p, b2_p)

    return out_padded[:B, :C]


def init_params(key, input_dim, inner_dim, num_classes, dtype=jnp.float32):
    """Deterministic init mimicking nn.Linear default (uniform +/-1/sqrt(fan_in))."""
    k1, k2, k3, k4 = jax.random.split(key, 4)
    bound1 = 1.0 / (input_dim ** 0.5)
    bound2 = 1.0 / (inner_dim ** 0.5)
    w1 = jax.random.uniform(k1, (input_dim, inner_dim), dtype, -bound1, bound1)
    b1 = jax.random.uniform(k2, (1, inner_dim), dtype, -bound1, bound1)
    w2 = jax.random.uniform(k3, (inner_dim, num_classes), dtype, -bound2, bound2)
    b2 = jax.random.uniform(k4, (1, num_classes), dtype, -bound2, bound2)
    return w1, b1, w2, b2


if __name__ == "__main__":
    batch, input_dim, inner_dim, num_classes = 8, 32, 64, 8

    key = jax.random.PRNGKey(0)
    kx, kp = jax.random.split(key)
    x = jax.random.normal(kx, (batch, input_dim), jnp.float32)
    w1, b1, w2, b2 = init_params(kp, input_dim, inner_dim, num_classes)

    # Reference in plain JAX (same eval-mode semantics as the PyTorch module).
    ref = jnp.tanh(x @ w1 + b1) @ w2 + b2

    # Exact f32 path.
    out_f32 = jax.block_until_ready(linear_head(x, w1, b1, w2, b2, use_bf16=False))
    assert out_f32.shape == (batch, num_classes), out_f32.shape
    assert jnp.allclose(out_f32, ref, atol=1e-5, rtol=1e-5), float(
        jnp.max(jnp.abs(out_f32 - ref)))

    # Default bf16-streamed path (f32 accumulation) — looser tolerance is the
    # deliberate precision/throughput trade from the review.
    out_bf16 = jax.block_until_ready(linear_head(x, w1, b1, w2, b2))
    assert out_bf16.shape == (batch, num_classes), out_bf16.shape
    assert jnp.allclose(out_bf16, ref, atol=3e-2, rtol=3e-2), float(
        jnp.max(jnp.abs(out_bf16 - ref)))

    print("KERNEL_OK")
</pallas_src>

<mosaic_0001>
module attributes {stable_mosaic.version = 11 : i64} {
  func.func @_linear_head_kernel(%arg0: i32, %arg1: i32, %arg2: memref<8x128xf32, #tpu.memory_space<vmem>>, %arg3: memref<128x64xf32, #tpu.memory_space<vmem>>, %arg4: memref<1x64xf32, #tpu.memory_space<vmem>>, %arg5: memref<64x128xf32, #tpu.memory_space<vmem>>, %arg6: memref<1x128xf32, #tpu.memory_space<vmem>>, %arg7: memref<8x128xf32, #tpu.memory_space<vmem>>, %arg8: memref<8x64xf32, #tpu.memory_space<vmem>>) attributes {dimension_semantics = [#tpu.dimension_semantics<parallel>, #tpu.dimension_semantics<arbitrary>], iteration_bounds = array<i64: 1, 1>, scalar_prefetch = 0 : i64, scratch_operands = 1 : i64, tpu.core_type = #tpu.core_type<tc>, window_params = [{transform_indices = @transform_0, window_bounds = array<i64: 8, 128>}, {transform_indices = @transform_1, window_bounds = array<i64: 128, 64>}, {pipeline_mode = #tpu.pipeline_mode<synchronous>, transform_indices = @transform_2, window_bounds = array<i64: 1, 64>}, {pipeline_mode = #tpu.pipeline_mode<synchronous>, transform_indices = @transform_3, window_bounds = array<i64: 64, 128>}, {pipeline_mode = #tpu.pipeline_mode<synchronous>, transform_indices = @transform_4, window_bounds = array<i64: 1, 128>}, {transform_indices = @transform_5, window_bounds = array<i64: 8, 128>}]} {
    %c0_i32 = arith.constant 0 : i32
    %0 = arith.cmpi eq, %arg1, %c0_i32 : i32
    %1 = arith.extui %0 : i1 to i32
    %c0_i32_0 = arith.constant 0 : i32
    %2 = arith.cmpi ne, %1, %c0_i32_0 : i32
    scf.if %2 {
      %cst_10 = arith.constant 0.000000e+00 : f32
      %12 = vector.broadcast %cst_10 : f32 to vector<8x64xf32>
      %c0_11 = arith.constant 0 : index
      %c0_12 = arith.constant 0 : index
      %13 = vector.load %arg8[%c0_11, %c0_12] : memref<8x64xf32, #tpu.memory_space<vmem>>, vector<8x64xf32>
      tpu.vector_store %arg8[%c0_11, %c0_12], %12 {strides = array<i32>} : memref<8x64xf32, #tpu.memory_space<vmem>>, vector<8x64xf32>,
    } else {
    }
    %c0 = arith.constant 0 : index
    %c0_1 = arith.constant 0 : index
    %3 = vector.load %arg8[%c0, %c0_1] : memref<8x64xf32, #tpu.memory_space<vmem>>, vector<8x64xf32>
    %c0_2 = arith.constant 0 : index
    %c0_3 = arith.constant 0 : index
    %4 = vector.load %arg2[%c0_2, %c0_3] : memref<8x128xf32, #tpu.memory_space<vmem>>, vector<8x128xf32>
    %c0_4 = arith.constant 0 : index
    %c0_5 = arith.constant 0 : index
    %5 = vector.load %arg3[%c0_4, %c0_5] : memref<128x64xf32, #tpu.memory_space<vmem>>, vector<128x64xf32>
    %cst = arith.constant dense<0.000000e+00> : vector<8x64xf32>
    %6 = tpu.matmul %4, %5, %cst {dimension_numbers = #tpu.dot_dimension_numbers<[1], [0], [0], [1], [0, 0, 1, 1], [], []>} : vector<8x128xf32>, vector<128x64xf32>, vector<8x64xf32> -> vector<8x64xf32>
    %7 = arith.addf %3, %6 : vector<8x64xf32>
    %c0_6 = arith.constant 0 : index
    %c0_7 = arith.constant 0 : index
    %8 = vector.load %arg8[%c0_6, %c0_7] : memref<8x64xf32, #tpu.memory_space<vmem>>, vector<8x64xf32>
    tpu.vector_store %arg8[%c0_6, %c0_7], %7 {strides = array<i32>} : memref<8x64xf32, #tpu.memory_space<vmem>>, vector<8x64xf32>,
    %c0_i32_8 = arith.constant 0 : i32
    %9 = arith.cmpi eq, %arg1, %c0_i32_8 : i32
    %10 = arith.extui %9 : i1 to i32
    %c0_i32_9 = arith.constant 0 : i32
    %11 = arith.cmpi ne, %10, %c0_i32_9 : i32
    scf.if %11 {
      %c0_10 = arith.constant 0 : index
      %c0_11 = arith.constant 0 : index
      %12 = vector.load %arg8[%c0_10, %c0_11] : memref<8x64xf32, #tpu.memory_space<vmem>>, vector<8x64xf32>
      %c0_12 = arith.constant 0 : index
      %c0_13 = arith.constant 0 : index
      %13 = vector.load %arg4[%c0_12, %c0_13] : memref<1x64xf32, #tpu.memory_space<vmem>>, vector<1x64xf32>
      %14 = vector.broadcast %13 : vector<1x64xf32> to vector<8x64xf32>
      %15 = arith.addf %12, %14 : vector<8x64xf32>
      %16 = math.tanh %15 : vector<8x64xf32>
      %c0_14 = arith.constant 0 : index
      %c0_15 = arith.constant 0 : index
      %17 = vector.load %arg5[%c0_14, %c0_15] : memref<64x128xf32, #tpu.memory_space<vmem>>, vector<64x128xf32>
      %cst_16 = arith.constant dense<0.000000e+00> : vector<8x128xf32>
      %18 = tpu.matmul %16, %17, %cst_16 {dimension_numbers = #tpu.dot_dimension_numbers<[1], [0], [0], [1], [0, 0, 1, 1], [], []>} : vector<8x64xf32>, vector<64x128xf32>, vector<8x128xf32> -> vector<8x128xf32>
      %c0_17 = arith.constant 0 : index
      %c0_18 = arith.constant 0 : index
      %19 = vector.load %arg6[%c0_17, %c0_18] : memref<1x128xf32, #tpu.memory_space<vmem>>, vector<1x128xf32>
      %20 = vector.broadcast %19 : vector<1x128xf32> to vector<8x128xf32>
      %21 = arith.addf %18, %20 : vector<8x128xf32>
      %c0_19 = arith.constant 0 : index
      %c0_20 = arith.constant 0 : index
      %22 = vector.load %arg7[%c0_19, %c0_20] : memref<8x128xf32, #tpu.memory_space<vmem>>, vector<8x128xf32>
      tpu.vector_store %arg7[%c0_19, %c0_20], %21 {strides = array<i32>} : memref<8x128xf32, #tpu.memory_space<vmem>>, vector<8x128xf32>,
    } else {
    }
    return
  }
  func.func @transform_0(%arg0: i32, %arg1: i32) -> (i32, i32) {
    %c0_i32 = arith.constant 0 : i32
    return %arg0, %arg1 : i32, i32
  }
  func.func @transform_1(%arg0: i32, %arg1: i32) -> (i32, i32) {
    %c0_i32 = arith.constant 0 : i32
    %c0_i32_0 = arith.constant 0 : i32
    return %arg1, %c0_i32 : i32, i32
  }
  func.func @transform_2(%arg0: i32, %arg1: i32) -> (i32, i32) {
    %c0_i32 = arith.constant 0 : i32
    %c0_i32_0 = arith.constant 0 : i32
    %c0_i32_1 = arith.constant 0 : i32
    return %c0_i32, %c0_i32_0 : i32, i32
  }
  func.func @transform_3(%arg0: i32, %arg1: i32) -> (i32, i32) {
    %c0_i32 = arith.constant 0 : i32
    %c0_i32_0 = arith.constant 0 : i32
    %c0_i32_1 = arith.constant 0 : i32
    return %c0_i32, %c0_i32_0 : i32, i32
  }
  func.func @transform_4(%arg0: i32, %arg1: i32) -> (i32, i32) {
    %c0_i32 = arith.constant 0 : i32
    %c0_i32_0 = arith.constant 0 : i32
    %c0_i32_1 = arith.constant 0 : i32
    return %c0_i32, %c0_i32_0 : i32, i32
  }
  func.func @transform_5(%arg0: i32, %arg1: i32) -> (i32, i32) {
    %c0_i32 = arith.constant 0 : i32
    %c0_i32_0 = arith.constant 0 : i32
    return %arg0, %c0_i32 : i32, i32
  }
}

</mosaic_0001>

<llo_original>
// kernel: linear_head.1
$region0: #{linear_head.1}
  #allocation0 [shape = 'u32[]', space=smem, size = 0x4, offset = 0x4, fixed_abs, tag = 'smem constant byte address 0x4 - core index']
  #allocation1 [shape = 'u32[144,128]{1,0:T(1,128)}', space=vmem, size = 0x12000, scoped, tag = 'internal scratch']
  #allocation2 [shape = 'f32[8,64]{1,0:T(8,128)}', space=vmem, size = 0x1000, scoped, tag = 'scratch operand']
  %s0 = inlined_call_operand.vmem [shape: f32[8,128], index: 0, kind: input, shape index: {}]
  %s1 = inlined_call_operand.vmem [shape: f32[128,64], index: 1, kind: input, shape index: {}]
  %s2 = inlined_call_operand.vmem [shape: f32[1,64], index: 2, kind: input, shape index: {}]
  %s3 = inlined_call_operand.vmem [shape: f32[64,128], index: 3, kind: input, shape index: {}]
  %s4 = inlined_call_operand.vmem [shape: f32[1,128], index: 4, kind: input, shape index: {}]
  %s5 = inlined_call_operand.hbm [shape: f32[8,128], index: 5, kind: output, shape index: {}]
  %s6 = sld [smem:[#allocation0]]
  $region38: #{linear_head.1} parent=0
    _
  %s8 = ssub.s32 1, %s6
  %s9 = scalar_select 0, %s8, %s6
  $region1: #{linear_head.1} parent=0
    #allocation3 [shape = 'u8[4096]{0}', space=vmem, size = 0x1000, scoped, tag = 'output window, operand 0, single buffered']
    #allocation4 [shape = 's32[1]{0}', space=sflag, size = 0x4, scoped, tag = 'scoped memory for linear_head.1']
    %10 = vsyncpa [#allocation4], 0
    // Predicated region
    $region2: #{linear_head.1} parent=1 // pred_check
      _
    $region3: #{linear_head.1} parent=1 // pred_check_branch
      %12 = sbr.rel (0) target = $region5
    $region4: #{linear_head.1} parent=1 // pred_region
      _
    $region5: #{linear_head.1} parent=1 // pred_fallthru
      _
    // Predicated region
    $region6: #{linear_head.1} parent=1 // pred_check
      _
    $region7: #{linear_head.1} parent=1 // pred_check_branch
      %14 = sbr.rel (0) target = $region9
    $region8: #{linear_head.1} parent=1 // pred_region
      _
    $region9: #{linear_head.1} parent=1 // pred_fallthru
      _
    // Predicated region
    $region10: #{linear_head.1} parent=1 // pred_check
      _
    $region11: #{linear_head.1} parent=1 // pred_check_branch
      %16 = sbr.rel (0) target = $region13
    $region12: #{linear_head.1} parent=1 // pred_region
      _
    $region13: #{linear_head.1} parent=1 // pred_fallthru
      _
    // Predicated region
    $region14: #{linear_head.1} parent=1 // pred_check
      _
    $region15: #{linear_head.1} parent=1 // pred_check_branch
      %18 = sbr.rel (0) target = $region17
    $region16: #{linear_head.1} parent=1 // pred_region
      _
    $region17: #{linear_head.1} parent=1 // pred_fallthru
      _
    // Predicated region
    $region18: #{linear_head.1} parent=1 // pred_check
      _
    $region19: #{linear_head.1} parent=1 // pred_check_branch
      %20 = sbr.rel (0) target = $region21
    $region20: #{linear_head.1} parent=1 // pred_region
      _
    $region21: #{linear_head.1} parent=1 // pred_fallthru
      _
    %p21 = scmp.eq.s32.totalorder 0, 0
    // Predicated region
    $region22: #{linear_head.1} parent=1 // pred_check
      %p22 = pneg %p21
    $region23: #{linear_head.1} parent=1 // pred_check_branch
      %24 = sbr.rel (%p22) target = $region25
    $region24: #{linear_head.1} parent=1 // pred_region
      %vm25 = vcmask 523264
      %26 = vst.msk [vmem:[#allocation2] sm:$0xff] %vm25, 0.0
    $region25: #{linear_head.1} parent=1 // pred_fallthru
      _
    %v27 = vld [vmem:[#allocation2] sm:$0xff]
    %v28 = vld [vmem:[%s0] sm:$0xff]
    %v29 = vld [vmem:[%s1] sm:$0xff]
    %v30 = vld [vmem:[%s1 + $0x8] sm:$0xff]
    %v31 = vld [vmem:[%s1 + $0x10] sm:$0xff]
    %v32 = vld [vmem:[%s1 + $0x18] sm:$0xff]
    %v33 = vld [vmem:[%s1 + $0x20] sm:$0xff]
    %v34 = vld [vmem:[%s1 + $0x28] sm:$0xff]
    %v35 = vld [vmem:[%s1 + $0x30] sm:$0xff]
    %v36 = vld [vmem:[%s1 + $0x38] sm:$0xff]
    %v37 = vld [vmem:[%s1 + $0x40] sm:$0xff]
    %v38 = vld [vmem:[%s1 + $0x48] sm:$0xff]
    %v39 = vld [vmem:[%s1 + $0x50] sm:$0xff]
    %v40 = vld [vmem:[%s1 + $0x58] sm:$0xff]
    %v41 = vld [vmem:[%s1 + $0x60] sm:$0xff]
    %v42 = vld [vmem:[%s1 + $0x68] sm:$0xff]
    %v43 = vld [vmem:[%s1 + $0x70] sm:$0xff]
    %v44 = vld [vmem:[%s1 + $0x78] sm:$0xff]
    %45 = vmatprep.subr.mxu0 0.0
    %46 = vmatpush1.msra.mxu0 %v44
    %47 = vmatprep.subr.mxu0 0.0
    %48 = vmatpush1.msra.mxu0 %v43
    %49 = vmatprep.subr.mxu0 0.0
    %50 = vmatpush1.msra.mxu0 %v42
    %51 = vmatprep.subr.mxu0 0.0
    %52 = vmatpush1.msra.mxu0 %v41
    %53 = vmatprep.subr.mxu0 0.0
    %54 = vmatpush1.msra.mxu0 %v40
    %55 = vmatprep.subr.mxu0 0.0
    %56 = vmatpush1.msra.mxu0 %v39
    %57 = vmatprep.subr.mxu0 0.0
    %58 = vmatpush1.msra.mxu0 %v38
    %59 = vmatprep.subr.mxu0 0.0
    %60 = vmatpush1.msra.mxu0 %v37
    %61 = vmatprep.subr.mxu0 0.0
    %62 = vmatpush1.msra.mxu0 %v36
    %63 = vmatprep.subr.mxu0 0.0
    %64 = vmatpush1.msra.mxu0 %v35
    %65 = vmatprep.subr.mxu0 0.0
    %66 = vmatpush1.msra.mxu0 %v34
    %67 = vmatprep.subr.mxu0 0.0
    %68 = vmatpush1.msra.mxu0 %v33
    %69 = vmatprep.subr.mxu0 0.0
    %70 = vmatpush1.msra.mxu0 %v32
    %71 = vmatprep.subr.mxu0 0.0
    %72 = vmatpush1.msra.mxu0 %v31
    %73 = vmatprep.subr.mxu0 0.0
    %74 = vmatpush1.msra.mxu0 %v30
    %75 = vmatprep.subr.mxu0 0.0
    %76 = vmatpush1.msra.mxu0 %v29
    %77 = vmatprep.subr.mxu0 0.0
    %78 = vmatpush2.msra.mxu0 0.0
    %79 = vmatprep.subr.mxu0 0.0
    %80 = vmatpush2.msra.mxu0 0.0
    %81 = vmatprep.subr.mxu0 0.0
    %82 = vmatpush2.msra.mxu0 0.0
    %83 = vmatprep.subr.mxu0 0.0
    %84 = vmatpush2.msra.mxu0 0.0
    %85 = vmatprep.subr.mxu0 0.0
    %86 = vmatpush2.msra.mxu0 0.0
    %87 = vmatprep.subr.mxu0 0.0
    %88 = vmatpush2.msra.mxu0 0.0
    %89 = vmatprep.subr.mxu0 0.0
    %90 = vmatpush2.msra.mxu0 0.0
    %91 = vmatprep.subr.mxu0 0.0
    %92 = vmatpush2.msra.mxu0 0.0
    %93 = vmatprep.subr.mxu0 0.0
    %94 = vmatpush2.msra.mxu0 0.0
    %95 = vmatprep.subr.mxu0 0.0
    %96 = vmatpush2.msra.mxu0 0.0
    %97 = vmatprep.subr.mxu0 0.0
    %98 = vmatpush2.msra.mxu0 0.0
    %99 = vmatprep.subr.mxu0 0.0
    %100 = vmatpush2.msra.mxu0 0.0
    %101 = vmatprep.subr.mxu0 0.0
    %102 = vmatpush2.msra.mxu0 0.0
    %103 = vmatprep.subr.mxu0 0.0
    %104 = vmatpush2.msra.mxu0 0.0
    %105 = vmatprep.subr.mxu0 0.0
    %106 = vmatpush2.msra.mxu0 0.0
    %107 = vmatprep.subr.mxu0 0.0
    %108 = vmatpush2.msra.mxu0 0.0
    %109 = vmatprep.mubr.f32.mxu0 0.0
    %110 = vmatmul.mubr.f32.gmra.mxu0 %v28
    %v111 = vpop.f32.mrf.mxu0
    %v112 = vadd.f32 0.0, %v111
    %v113 = vpop.f32.mrf.mxu0
    %114 = vdwg.mxu0
    %v115 = vadd.f32 %v27, %v112
    %vm116 = vcmask 523264
    %117 = vst.msk [vmem:[#allocation2] sm:$0xff] %vm116, %v115
    // Predicated region
    $region26: #{linear_head.1} parent=1 // pred_check
      %p118 = pneg %p21
    $region27: #{linear_head.1} parent=1 // pred_check_branch
      %120 = sbr.rel (%p118) target = $region29
    $region28: #{linear_head.1} parent=1 // pred_region
      %v121 = vld [vmem:[#allocation2] sm:$0xff]
      %v122 = vld [vmem:[%s2] sm:$0x1]
      %v124 = vlaneseq
      %v125 = vshrl.u32 %v124, 7
      %v126 = vsub.s32 0, %v125
      %v127 = vrot.slane %v122, %v126
      %v129 = vadd.f32 %v121, %v127
      %v130 = vtanh.pop %v129
      %v131 = vld [vmem:[%s3] sm:$0xff]
      %v132 = vld [vmem:[%s3 + $0x8] sm:$0xff]
      %v133 = vld [vmem:[%s3 + $0x10] sm:$0xff]
      %v134 = vld [vmem:[%s3 + $0x18] sm:$0xff]
      %v135 = vld [vmem:[%s3 + $0x20] sm:$0xff]
      %v136 = vld [vmem:[%s3 + $0x28] sm:$0xff]
      %v137 = vld [vmem:[%s3 + $0x30] sm:$0xff]
      %v138 = vld [vmem:[%s3 + $0x38] sm:$0xff]
      %v139 = vld [vmem:[%s4] sm:$0x1]
      %v141 = vlaneseq
      %v142 = vshrl.u32 %v141, 7
      %v143 = vsub.s32 0, %v142
      %v144 = vrot.slane %v139, %v143
      %v147 = vsel %vm116, %v130, 0
      %149 = vmatprep.subr.mxu0 0.0
      %150 = vmatpush1.msra.mxu0 0.0
      %151 = vmatprep.subr.mxu0 0.0
      %152 = vmatpush1.msra.mxu0 0.0
      %153 = vmatprep.subr.mxu0 0.0
      %154 = vmatpush1.msra.mxu0 0.0
      %155 = vmatprep.subr.mxu0 0.0
      %156 = vmatpush1.msra.mxu0 0.0
      %157 = vmatprep.subr.mxu0 0.0
      %158 = vmatpush1.msra.mxu0 0.0
      %159 = vmatprep.subr.mxu0 0.0
      %160 = vmatpush1.msra.mxu0 0.0
      %161 = vmatprep.subr.mxu0 0.0
      %162 = vmatpush1.msra.mxu0 0.0
      %163 = vmatprep.subr.mxu0 0.0
      %164 = vmatpush1.msra.mxu0 0.0
      %165 = vmatprep.subr.mxu0 0.0
      %166 = vmatpush1.msra.mxu0 %v138
      %167 = vmatprep.subr.mxu0 0.0
      %168 = vmatpush1.msra.mxu0 %v137
      %169 = vmatprep.subr.mxu0 0.0
      %170 = vmatpush1.msra.mxu0 %v136
      %171 = vmatprep.subr.mxu0 0.0
      %172 = vmatpush1.msra.mxu0 %v135
      %173 = vmatprep.subr.mxu0 0.0
      %174 = vmatpush1.msra.mxu0 %v134
      %175 = vmatprep.subr.mxu0 0.0
      %176 = vmatpush1.msra.mxu0 %v133
      %177 = vmatprep.subr.mxu0 0.0
      %178 = vmatpush1.msra.mxu0 %v132
      %179 = vmatprep.subr.mxu0 0.0
      %180 = vmatpush1.msra.mxu0 %v131
      %181 = vmatprep.subr.mxu0 0.0
      %182 = vmatpush2.msra.mxu0 0.0
      %183 = vmatprep.subr.mxu0 0.0
      %184 = vmatpush2.msra.mxu0 0.0
      %185 = vmatprep.subr.mxu0 0.0
      %186 = vmatpush2.msra.mxu0 0.0
      %187 = vmatprep.subr.mxu0 0.0
      %188 = vmatpush2.msra.mxu0 0.0
      %189 = vmatprep.subr.mxu0 0.0
      %190 = vmatpush2.msra.mxu0 0.0
      %191 = vmatprep.subr.mxu0 0.0
      %192 = vmatpush2.msra.mxu0 0.0
      %193 = vmatprep.subr.mxu0 0.0
      %194 = vmatpush2.msra.mxu0 0.0
      %195 = vmatprep.subr.mxu0 0.0
      %196 = vmatpush2.msra.mxu0 0.0
      %197 = vmatprep.subr.mxu0 0.0
      %198 = vmatpush2.msra.mxu0 0.0
      %199 = vmatprep.subr.mxu0 0.0
      %200 = vmatpush2.msra.mxu0 0.0
      %201 = vmatprep.subr.mxu0 0.0
      %202 = vmatpush2.msra.mxu0 0.0
      %203 = vmatprep.subr.mxu0 0.0
      %204 = vmatpush2.msra.mxu0 0.0
      %205 = vmatprep.subr.mxu0 0.0
      %206 = vmatpush2.msra.mxu0 0.0
      %207 = vmatprep.subr.mxu0 0.0
      %208 = vmatpush2.msra.mxu0 0.0
      %209 = vmatprep.subr.mxu0 0.0
      %210 = vmatpush2.msra.mxu0 0.0
      %211 = vmatprep.subr.mxu0 0.0
      %212 = vmatpush2.msra.mxu0 0.0
      %213 = vmatprep.mubr.f32.mxu0 0.0
      %214 = vmatmul.mubr.f32.gmra.mxu0 %v147
      %v215 = vpop.f32.mrf.mxu0
      %v216 = vadd.f32 %v144, %v215
      %v217 = vpop.f32.mrf.mxu0
      %218 = vdwg.mxu0
      %219 = vst [vmem:[#allocation3] sm:$0xff] %v216
    $region29: #{linear_head.1} parent=1 // pred_fallthru
      _
    // Predicated region
    $region30: #{linear_head.1} parent=1 // pred_check
      _
    $region31: #{linear_head.1} parent=1 // pred_check_branch
      %221 = sbr.rel (0) target = $region33
    $region32: #{linear_head.1} parent=1 // pred_region
      %s223 = ssub.s32 128, 128
      %224 = vsyncadd [#allocation4], %s223
      %s226 = sshll.u32 [#allocation3], 4
      %s227 = int_to_ptr.vmem [resolvable:$true] %s226
      %229 = dma.vmem_to_hbm [thread:$0]  %s227, 128, %s5, [#allocation4]
    $region33: #{linear_head.1} parent=1 // pred_fallthru
      _
    // Predicated region
    $region34: #{linear_head.1} parent=1 // pred_check
      _
    $region35: #{linear_head.1} parent=1 // pred_check_branch
      %231 = sbr.rel (0) target = $region37
    $region36: #{linear_head.1} parent=1 // pred_region
      %232 = dma.done [#allocation4], 128
    $region37: #{linear_head.1} parent=1 // pred_fallthru
      _
    %233 = vsyncpa [#allocation4], 1

</llo_original>
